<compile_context>
chip_gen: v6e
topology: v6e:2x2x1
jax: 0.10.0
libtpu: 0.0.40
codegen_flags: <defaults>
</compile_context>

<pallas_src>
import functools

import jax
import jax.numpy as jnp
from jax.experimental import pallas as pl
from jax.experimental.pallas import tpu as pltpu


def _relu_dw_pw(x_b, wdw, wpw_bf, xpad_ref, *,
                K, stride, dilation, padding, L, L_out, align):
    """Shared conv body: ReLU -> depthwise dilated conv -> pointwise 1x1 (MXU).

    x_b:      (C_in, L) f32 value (not yet ReLU'd)
    wdw:      (C_in, K) f32 depthwise taps (loaded value)
    wpw_bf:   (C_out, C_in) bf16 pointwise weight (loaded value)
    xpad_ref: (C_in, align + L + padding) f32 VMEM scratch
    returns:  (C_out, L_out) f32
    """
    C_in = x_b.shape[0]
    tap0 = align - padding                       # static, >= 0 since align >= padding
    L_dense = L + 2 * padding - dilation * (K - 1)

    # ReLU once (hoisted), zero-pad into VMEM scratch; x lands 128-lane aligned.
    if padding > 0:
        zpad = jnp.zeros((C_in, padding), jnp.float32)
        xpad_ref[:, pl.ds(tap0, padding)] = zpad
        xpad_ref[:, pl.ds(align + L, padding)] = zpad
    xpad_ref[:, pl.ds(align, L)] = jnp.maximum(x_b, 0.0)

    # Depthwise dilated conv: contiguous tap loads; acc initialised from tap 0.
    acc = xpad_ref[:, pl.ds(tap0, L_dense)] * wdw[:, 0:1]
    for k in range(1, K):
        acc = acc + xpad_ref[:, pl.ds(tap0 + k * dilation, L_dense)] * wdw[:, k:k + 1]

    if stride > 1:
        # Single strided subsample of the dense result (taps above stay contiguous).
        xpad_ref[:, pl.ds(0, L_dense)] = acc
        acc = xpad_ref[:, pl.ds(0, L_out, stride)]

    # Pointwise 1x1 conv on the MXU: bf16 inputs, f32 accumulate.
    return jnp.dot(wpw_bf, acc.astype(jnp.bfloat16),
                   preferred_element_type=jnp.float32)        # (C_out, L_out)


def _dilconv_stats_kernel(x_ref, wdw_ref, wpw_ref, stats_ref, xpad_ref, *,
                          NB, K, stride, dilation, padding, L, L_out, align):
    # x_ref: (NB, C_in, L); stats_ref: (1, C_out, 2) -> [:, :, 0]=sum, [:, :, 1]=sum(y^2)
    C_out = stats_ref.shape[1]
    wdw = wdw_ref[...]
    wpw_bf = wpw_ref[...].astype(jnp.bfloat16)
    s = jnp.zeros((C_out, 1), jnp.float32)
    s2 = jnp.zeros((C_out, 1), jnp.float32)
    for b in range(NB):
        y = _relu_dw_pw(x_ref[b], wdw, wpw_bf, xpad_ref,
                        K=K, stride=stride, dilation=dilation, padding=padding,
                        L=L, L_out=L_out, align=align)
        s = s + jnp.sum(y, axis=1, keepdims=True)
        s2 = s2 + jnp.sum(y * y, axis=1, keepdims=True)
    # Merged stats block: one output / one DMA per grid step instead of two.
    stats_ref[0] = jnp.concatenate([s, s2], axis=1)


def _dilconv_apply_kernel(x_ref, wdw_ref, wpw_ref, scale_ref, shift_ref,
                          out_ref, xpad_ref, *,
                          NB, K, stride, dilation, padding, L, L_out, align):
    # Recompute the conv from x and apply the BN affine in the same pass (no y read).
    wdw = wdw_ref[...]
    wpw_bf = wpw_ref[...].astype(jnp.bfloat16)
    scale = scale_ref[...]                                    # (C_out, 1)
    shift = shift_ref[...]                                    # (C_out, 1)
    for b in range(NB):
        y = _relu_dw_pw(x_ref[b], wdw, wpw_bf, xpad_ref,
                        K=K, stride=stride, dilation=dilation, padding=padding,
                        L=L, L_out=L_out, align=align)
        out_ref[b] = (y * scale + shift).astype(out_ref.dtype)


def dilconv_forward(x_ncl, w_dw, w_pw, gamma, beta, *,
                    stride, padding, dilation, eps=1e-5):
    """x_ncl: (N, C_in, L) f32.  w_dw: (C_in, 1, K).  w_pw: (C_out, C_in, 1)."""
    N, C_in, L = x_ncl.shape
    C_out = w_pw.shape[0]
    K = w_dw.shape[2]
    L_out = (L + 2 * padding - dilation * (K - 1) - 1) // stride + 1
    align = ((padding + 127) // 128) * 128 if padding > 0 else 0
    L_pad_alloc = align + L + padding

    # Tiny weight reshapes only (no activation transposes / pads in the wrapper).
    wdw_ck = w_dw[:, 0, :]                                    # (C_in, K)
    wpw_oc = w_pw[:, :, 0]                                    # (C_out, C_in)

    # Pack several batch elements per grid step when C_in underfills the 8-sublane vreg.
    nb_target = max(1, 8 // max(C_in, 1))
    NB = 1
    for cand in range(min(nb_target, N), 0, -1):
        if N % cand == 0:
            NB = cand
            break
    num_blocks = N // NB

    # Rough working-set estimate -> explicit scoped-VMEM limit (v5e default is only 16 MiB).
    vmem_est = 4 * (2 * NB * C_in * L + 2 * NB * C_out * L_out
                    + C_in * L_pad_alloc + C_out * C_in + C_in * K
                    + 2 * C_out + (C_in + C_out) * max(L, L_out))
    vmem_limit = int(min(64 * 2 ** 20, max(32 * 2 ** 20, 2 * vmem_est)))
    cparams = pltpu.CompilerParams(dimension_semantics=("parallel",),
                                   vmem_limit_bytes=vmem_limit)

    conv_kwargs = dict(NB=NB, K=K, stride=stride, dilation=dilation,
                       padding=padding, L=L, L_out=L_out, align=align)

    # ---- Stage 1: BN partial statistics only (no pre-BN y written to HBM). ----
    stats = pl.pallas_call(
        functools.partial(_dilconv_stats_kernel, **conv_kwargs),
        grid=(num_blocks,),
        out_shape=jax.ShapeDtypeStruct((num_blocks, C_out, 2), jnp.float32),
        in_specs=[
            pl.BlockSpec((NB, C_in, L), lambda n: (n, 0, 0)),
            pl.BlockSpec((C_in, K), lambda n: (0, 0)),
            pl.BlockSpec((C_out, C_in), lambda n: (0, 0)),
        ],
        out_specs=pl.BlockSpec((1, C_out, 2), lambda n: (n, 0, 0)),
        scratch_shapes=[pltpu.VMEM((C_in, L_pad_alloc), jnp.float32)],
        compiler_params=cparams,
    )(x_ncl, wdw_ck, wpw_oc)

    # ---- Fold BN stats into per-channel scale/shift (tiny (C_out,) math). ----
    count = N * L_out
    mean = jnp.sum(stats[:, :, 0], axis=0) / count            # (C_out,)
    ex2 = jnp.sum(stats[:, :, 1], axis=0) / count
    # NOTE: single-pass E[y^2] - mean^2 in f32 (train-mode biased variance); clamp guards
    # cancellation-induced tiny negatives.  A centered second pass would cost a third
    # sweep over x with this fused design.
    var = jnp.maximum(ex2 - mean * mean, 0.0)
    scale = gamma * jax.lax.rsqrt(var + eps)
    shift = beta - mean * scale

    # ---- Stage 2: recompute conv from x and apply BN affine in one fused pass. ----
    out = pl.pallas_call(
        functools.partial(_dilconv_apply_kernel, **conv_kwargs),
        grid=(num_blocks,),
        out_shape=jax.ShapeDtypeStruct((N, C_out, L_out), jnp.float32),
        in_specs=[
            pl.BlockSpec((NB, C_in, L), lambda n: (n, 0, 0)),
            pl.BlockSpec((C_in, K), lambda n: (0, 0)),
            pl.BlockSpec((C_out, C_in), lambda n: (0, 0)),
            pl.BlockSpec((C_out, 1), lambda n: (0, 0)),
            pl.BlockSpec((C_out, 1), lambda n: (0, 0)),
        ],
        out_specs=pl.BlockSpec((NB, C_out, L_out), lambda n: (n, 0, 0)),
        scratch_shapes=[pltpu.VMEM((C_in, L_pad_alloc), jnp.float32)],
        compiler_params=cparams,
    )(x_ncl, wdw_ck, wpw_oc, scale.reshape(C_out, 1), shift.reshape(C_out, 1))

    return out                                                # (N, C_out, L_out)


def dilconv_reference(x_ncl, w_dw, w_pw, gamma, beta, *,
                      stride, padding, dilation, eps=1e-5):
    """Pure-JAX reference mirroring the PyTorch module (train-mode BatchNorm)."""
    C_in = x_ncl.shape[1]
    h = jnp.maximum(x_ncl, 0.0)
    h = jax.lax.conv_general_dilated(
        h, w_dw, window_strides=(stride,), padding=[(padding, padding)],
        rhs_dilation=(dilation,), dimension_numbers=("NCH", "OIH", "NCH"),
        feature_group_count=C_in, precision=jax.lax.Precision.HIGHEST)
    h = jax.lax.conv_general_dilated(
        h, w_pw, window_strides=(1,), padding=[(0, 0)],
        dimension_numbers=("NCH", "OIH", "NCH"),
        precision=jax.lax.Precision.HIGHEST)
    mean = jnp.mean(h, axis=(0, 2), keepdims=True)
    var = jnp.mean((h - mean) ** 2, axis=(0, 2), keepdims=True)
    h = (h - mean) / jnp.sqrt(var + eps)
    return h * gamma[None, :, None] + beta[None, :, None]


if __name__ == "__main__":
    # DilConv(C_in=8, C_out=16, kernel_size=3, stride=1, padding=2, dilation=2)
    N, C_in, C_out, L = 2, 8, 16, 16
    K, stride, padding, dilation = 3, 1, 2, 2

    key = jax.random.PRNGKey(0)
    kx, kdw, kpw = jax.random.split(key, 3)
    x = jax.random.normal(kx, (N, C_in, L), jnp.float32)
    w_dw = jax.random.normal(kdw, (C_in, 1, K), jnp.float32) * 0.5      # depthwise conv weight
    w_pw = jax.random.normal(kpw, (C_out, C_in, 1), jnp.float32) * 0.5  # pointwise conv weight
    gamma = jnp.ones((C_out,), jnp.float32)   # BatchNorm affine init (PyTorch default)
    beta = jnp.zeros((C_out,), jnp.float32)

    out = dilconv_forward(x, w_dw, w_pw, gamma, beta,
                          stride=stride, padding=padding, dilation=dilation)
    out = jax.block_until_ready(out)

    ref = dilconv_reference(x, w_dw, w_pw, gamma, beta,
                            stride=stride, padding=padding, dilation=dilation)
    assert out.shape == ref.shape == (N, C_out, L)
    # Tolerance accounts for the bf16 MXU pointwise contraction (reference is f32 HIGHEST).
    assert jnp.allclose(out, ref, atol=2e-2, rtol=2e-2), "mismatch vs. reference"

    print("KERNEL_OK")
</pallas_src>

<mosaic_0001>
module attributes {stable_mosaic.version = 11 : i64} {
  func.func @_dilconv_stats_kernel(%arg0: i32, %arg1: memref<1x8x16xf32, #tpu.memory_space<vmem>>, %arg2: memref<8x3xf32, #tpu.memory_space<vmem>>, %arg3: memref<16x8xf32, #tpu.memory_space<vmem>>, %arg4: memref<1x16x2xf32, #tpu.memory_space<vmem>>, %arg5: memref<8x146xf32, #tpu.memory_space<vmem>>) attributes {dimension_semantics = [#tpu.dimension_semantics<parallel>], iteration_bounds = array<i64: 2>, scalar_prefetch = 0 : i64, scratch_operands = 1 : i64, tpu.core_type = #tpu.core_type<tc>, window_params = [{transform_indices = @transform_0, window_bounds = array<i64: 1, 8, 16>}, {pipeline_mode = #tpu.pipeline_mode<synchronous>, transform_indices = @transform_1, window_bounds = array<i64: 8, 3>}, {pipeline_mode = #tpu.pipeline_mode<synchronous>, transform_indices = @transform_2, window_bounds = array<i64: 16, 8>}, {transform_indices = @transform_3, window_bounds = array<i64: 1, 16, 2>}]} {
    %c0 = arith.constant 0 : index
    %c0_0 = arith.constant 0 : index
    %0 = vector.load %arg2[%c0, %c0_0] : memref<8x3xf32, #tpu.memory_space<vmem>>, vector<8x3xf32>
    %c0_1 = arith.constant 0 : index
    %c0_2 = arith.constant 0 : index
    %1 = vector.load %arg3[%c0_1, %c0_2] : memref<16x8xf32, #tpu.memory_space<vmem>>, vector<16x8xf32>
    %2 = arith.truncf %1 : vector<16x8xf32> to vector<16x8xbf16>
    %cst = arith.constant 0.000000e+00 : f32
    %3 = vector.broadcast %cst : f32 to vector<16x1xf32>
    %cst_3 = arith.constant 0.000000e+00 : f32
    %4 = vector.broadcast %cst_3 : f32 to vector<16x1xf32>
    %c0_4 = arith.constant 0 : index
    %c0_5 = arith.constant 0 : index
    %c0_6 = arith.constant 0 : index
    %5 = vector.load %arg1[%c0_4, %c0_5, %c0_6] : memref<1x8x16xf32, #tpu.memory_space<vmem>>, vector<1x8x16xf32>
    %6 = vector.shape_cast %5 : vector<1x8x16xf32> to vector<8x16xf32>
    %cst_7 = arith.constant 0.000000e+00 : f32
    %7 = vector.broadcast %cst_7 : f32 to vector<8x2xf32>
    %c0_8 = arith.constant 0 : index
    %c126 = arith.constant 126 : index
    %8 = vector.load %arg5[%c0_8, %c126] : memref<8x146xf32, #tpu.memory_space<vmem>>, vector<8x2xf32>
    tpu.vector_store %arg5[%c0_8, %c126], %7 {strides = array<i32>} : memref<8x146xf32, #tpu.memory_space<vmem>>, vector<8x2xf32>,
    %c0_9 = arith.constant 0 : index
    %c144 = arith.constant 144 : index
    %9 = vector.load %arg5[%c0_9, %c144] : memref<8x146xf32, #tpu.memory_space<vmem>>, vector<8x2xf32>
    tpu.vector_store %arg5[%c0_9, %c144], %7 {strides = array<i32>} : memref<8x146xf32, #tpu.memory_space<vmem>>, vector<8x2xf32>,
    %cst_10 = arith.constant 0.000000e+00 : f32
    %10 = vector.broadcast %cst_10 : f32 to vector<8x16xf32>
    %11 = arith.maximumf %6, %10 : vector<8x16xf32>
    %c0_11 = arith.constant 0 : index
    %c128 = arith.constant 128 : index
    %12 = vector.load %arg5[%c0_11, %c128] : memref<8x146xf32, #tpu.memory_space<vmem>>, vector<8x16xf32>
    tpu.vector_store %arg5[%c0_11, %c128], %11 {strides = array<i32>} : memref<8x146xf32, #tpu.memory_space<vmem>>, vector<8x16xf32>,
    %c0_12 = arith.constant 0 : index
    %c126_13 = arith.constant 126 : index
    %13 = vector.load %arg5[%c0_12, %c126_13] : memref<8x146xf32, #tpu.memory_space<vmem>>, vector<8x16xf32>
    %14 = vector.extract_strided_slice %0 {offsets = [0, 0], sizes = [8, 1], strides = [1, 1]} : vector<8x3xf32> to vector<8x1xf32>
    %15 = vector.broadcast %14 : vector<8x1xf32> to vector<8x16xf32>
    %16 = arith.mulf %13, %15 : vector<8x16xf32>
    %c0_14 = arith.constant 0 : index
    %c128_15 = arith.constant 128 : index
    %17 = vector.load %arg5[%c0_14, %c128_15] : memref<8x146xf32, #tpu.memory_space<vmem>>, vector<8x16xf32>
    %18 = vector.extract_strided_slice %0 {offsets = [0, 1], sizes = [8, 1], strides = [1, 1]} : vector<8x3xf32> to vector<8x1xf32>
    %19 = vector.broadcast %18 : vector<8x1xf32> to vector<8x16xf32>
    %20 = arith.mulf %17, %19 : vector<8x16xf32>
    %21 = arith.addf %16, %20 : vector<8x16xf32>
    %c0_16 = arith.constant 0 : index
    %c130 = arith.constant 130 : index
    %22 = vector.load %arg5[%c0_16, %c130] : memref<8x146xf32, #tpu.memory_space<vmem>>, vector<8x16xf32>
    %23 = vector.extract_strided_slice %0 {offsets = [0, 2], sizes = [8, 1], strides = [1, 1]} : vector<8x3xf32> to vector<8x1xf32>
    %24 = vector.broadcast %23 : vector<8x1xf32> to vector<8x16xf32>
    %25 = arith.mulf %22, %24 : vector<8x16xf32>
    %26 = arith.addf %21, %25 : vector<8x16xf32>
    %27 = arith.truncf %26 : vector<8x16xf32> to vector<8x16xbf16>
    %cst_17 = arith.constant dense<0.000000e+00> : vector<16x16xf32>
    %28 = tpu.matmul %2, %27, %cst_17 {dimension_numbers = #tpu.dot_dimension_numbers<[1], [0], [0], [1], [0, 0, 1, 1], [], []>} : vector<16x8xbf16>, vector<8x16xbf16>, vector<16x16xf32> -> vector<16x16xf32>
    %cst_18 = arith.constant dense<0.000000e+00> : vector<16xf32>
    %29 = vector.multi_reduction <add>, %28, %cst_18 [1] : vector<16x16xf32> to vector<16xf32>
    %30 = vector.shape_cast %29 : vector<16xf32> to vector<16x1xf32>
    %31 = arith.addf %3, %30 : vector<16x1xf32>
    %32 = arith.mulf %28, %28 : vector<16x16xf32>
    %cst_19 = arith.constant dense<0.000000e+00> : vector<16xf32>
    %33 = vector.multi_reduction <add>, %32, %cst_19 [1] : vector<16x16xf32> to vector<16xf32>
    %34 = vector.shape_cast %33 : vector<16xf32> to vector<16x1xf32>
    %35 = arith.addf %4, %34 : vector<16x1xf32>
    %36 = tpu.concatenate %31, %35 in 1 : vector<16x1xf32>, vector<16x1xf32> -> vector<16x2xf32>
    %c0_20 = arith.constant 0 : index
    %c0_21 = arith.constant 0 : index
    %c0_22 = arith.constant 0 : index
    %37 = vector.load %arg4[%c0_20, %c0_21, %c0_22] : memref<1x16x2xf32, #tpu.memory_space<vmem>>, vector<1x16x2xf32>
    %38 = vector.shape_cast %37 : vector<1x16x2xf32> to vector<16x2xf32>
    %39 = vector.shape_cast %36 : vector<16x2xf32> to vector<1x16x2xf32>
    tpu.vector_store %arg4[%c0_20, %c0_21, %c0_22], %39 {strides = array<i32>} : memref<1x16x2xf32, #tpu.memory_space<vmem>>, vector<1x16x2xf32>,
    return
  }
  func.func @transform_0(%arg0: i32) -> (i32, i32, i32) {
    %c0_i32 = arith.constant 0 : i32
    %c0_i32_0 = arith.constant 0 : i32
    %c0_i32_1 = arith.constant 0 : i32
    return %arg0, %c0_i32, %c0_i32_0 : i32, i32, i32
  }
  func.func @transform_1(%arg0: i32) -> (i32, i32) {
    %c0_i32 = arith.constant 0 : i32
    %c0_i32_0 = arith.constant 0 : i32
    %c0_i32_1 = arith.constant 0 : i32
    return %c0_i32, %c0_i32_0 : i32, i32
  }
  func.func @transform_2(%arg0: i32) -> (i32, i32) {
    %c0_i32 = arith.constant 0 : i32
    %c0_i32_0 = arith.constant 0 : i32
    %c0_i32_1 = arith.constant 0 : i32
    return %c0_i32, %c0_i32_0 : i32, i32
  }
  func.func @transform_3(%arg0: i32) -> (i32, i32, i32) {
    %c0_i32 = arith.constant 0 : i32
    %c0_i32_0 = arith.constant 0 : i32
    %c0_i32_1 = arith.constant 0 : i32
    return %arg0, %c0_i32, %c0_i32_0 : i32, i32, i32
  }
}

</mosaic_0001>

<llo_original>
// kernel: tpu_custom_call.1
$region0: #{tpu_custom_call.1}
  #allocation0 [shape = 'u32[]', space=smem, size = 0x4, offset = 0x4, fixed_abs, tag = 'smem constant byte address 0x4 - core index']
  #allocation1 [shape = 'u32[144,128]{1,0:T(1,128)}', space=vmem, size = 0x12000, scoped, tag = 'internal scratch']
  #allocation2 [shape = 'f32[8,146]{1,0:T(8,128)}', space=vmem, size = 0x2000, scoped, tag = 'scratch operand']
  %s0 = inlined_call_operand.vmem [shape: f32[2,8,16], index: 0, kind: input, shape index: {}]
  %s1 = inlined_call_operand.vmem [shape: f32[8,3], index: 1, kind: input, shape index: {}]
  %s2 = inlined_call_operand.vmem [shape: f32[16,8], index: 2, kind: input, shape index: {}]
  %s3 = inlined_call_operand.vmem [shape: f32[2,16,2], index: 3, kind: output, shape index: {}]
  %s4 = sld [smem:[#allocation0]]
  $region45: #{tpu_custom_call.1} parent=0
    _
  %s6 = ssub.s32 1, %s4
  %s7 = scalar_select 0, %s6, %s4
  loop: start=0, step=1, limit=4
  $region2: #{tpu_custom_call.1} parent=0 // loop_pre_header
    _
  $region3: #{tpu_custom_call.1} parent=0 // loop_header
    %s9 = sphi 0, %s13
    %p10 = scmp.ge.s32.totalorder %s9, 4
    %s19 = sphi 0, %s21
    %s22 = sphi 0, %s19
    %s23 = sphi 0, %s22
    %s39 = sphi 0, %s23
    %s43 = sphi 0, %s43
    %s45 = sphi 0, %s43
    %s46 = sphi 0, %s45
    %s60 = sphi 0, %s46
    %s64 = sphi 0, %s64
    %s66 = sphi 0, %s64
    %s67 = sphi 0, %s66
    %s81 = sphi 0, %s67
    %s87 = sphi 0, %s89
    %s90 = sphi 0, %s87
    %s91 = sphi 0, %s90
    %s107 = sphi 0, %s91
  $region4: #{tpu_custom_call.1} parent=0 // loop_header_branch
    %12 = sbr.rel (%p10) target = $region8
  $region5: #{tpu_custom_call.1} parent=0 // loop_body
    %s14 = ssub.s32 %s9, 1
    %s15 = ssub.s32 %s9, 2
    %s16 = sadd.s32 %s9, 1
    %s17 = ssub.s32 %s9, %s16
    %p18 = scmp.eq.s32.totalorder %s17, 0
    %s20 = sadd.s32 %s19, 1
    %s21 = scalar_select %p18, %s19, %s20
    %p24 = pneg %p18
    %p25 = scmp.eq.s32.totalorder %s9, 1
    %p26 = por %p24, %p25
    %p27 = scmp.ne.s32.totalorder %s19, %s22
    %p28 = scmp.eq.s32.totalorder %s9, 0
    %p29 = por %p27, %p28
    %p30 = scmp.ne.s32.totalorder %s19, %s22
    %p31 = scmp.eq.s32.totalorder %s14, 1
    %p32 = por %p30, %p31
    %p33 = scmp.ne.s32.totalorder %s22, %s23
    %p34 = scmp.eq.s32.totalorder %s14, 0
    %p35 = por %p33, %p34
    %p36 = scmp.ne.s32.totalorder %s22, %s23
    %p37 = scmp.eq.s32.totalorder %s15, 1
    %p38 = por %p36, %p37
    %p40 = scmp.ne.s32.totalorder %s23, %s39
    %p41 = scmp.eq.s32.totalorder %s15, 0
    %p42 = por %p40, %p41
    %s44 = sadd.s32 %s43, 1
    %p47 = scmp.eq.s32.totalorder %s9, 1
    %p48 = scmp.ne.s32.totalorder %s43, %s45
    %p49 = scmp.eq.s32.totalorder %s9, 0
    %p50 = por %p48, %p49
    %p51 = scmp.ne.s32.totalorder %s43, %s45
    %p52 = scmp.eq.s32.totalorder %s14, 1
    %p53 = por %p51, %p52
    %p54 = scmp.ne.s32.totalorder %s45, %s46
    %p55 = scmp.eq.s32.totalorder %s14, 0
    %p56 = por %p54, %p55
    %p57 = scmp.ne.s32.totalorder %s45, %s46
    %p58 = scmp.eq.s32.totalorder %s15, 1
    %p59 = por %p57, %p58
    %p61 = scmp.ne.s32.totalorder %s46, %s60
    %p62 = scmp.eq.s32.totalorder %s15, 0
    %p63 = por %p61, %p62
    %s65 = sadd.s32 %s64, 1
    %p68 = scmp.eq.s32.totalorder %s9, 1
    %p69 = scmp.ne.s32.totalorder %s64, %s66
    %p70 = scmp.eq.s32.totalorder %s9, 0
    %p71 = por %p69, %p70
    %p72 = scmp.ne.s32.totalorder %s64, %s66
    %p73 = scmp.eq.s32.totalorder %s14, 1
    %p74 = por %p72, %p73
    %p75 = scmp.ne.s32.totalorder %s66, %s67
    %p76 = scmp.eq.s32.totalorder %s14, 0
    %p77 = por %p75, %p76
    %p78 = scmp.ne.s32.totalorder %s66, %s67
    %p79 = scmp.eq.s32.totalorder %s15, 1
    %p80 = por %p78, %p79
    %p82 = scmp.ne.s32.totalorder %s67, %s81
    %p83 = scmp.eq.s32.totalorder %s15, 0
    %p84 = por %p82, %p83
    %s85 = ssub.s32 %s9, %s16
    %p86 = scmp.eq.s32.totalorder %s85, 0
    %s88 = sadd.s32 %s87, 1
    %s89 = scalar_select %p86, %s87, %s88
    %p92 = pneg %p86
    %p93 = scmp.eq.s32.totalorder %s9, 1
    %p94 = por %p92, %p93
    %p95 = scmp.ne.s32.totalorder %s87, %s90
    %p96 = scmp.eq.s32.totalorder %s9, 0
    %p97 = por %p95, %p96
    %p98 = scmp.ne.s32.totalorder %s87, %s90
    %p99 = scmp.eq.s32.totalorder %s14, 1
    %p100 = por %p98, %p99
    %p101 = scmp.ne.s32.totalorder %s90, %s91
    %p102 = scmp.eq.s32.totalorder %s14, 0
    %p103 = por %p101, %p102
    %p104 = scmp.ne.s32.totalorder %s90, %s91
    %p105 = scmp.eq.s32.totalorder %s15, 1
    %p106 = por %p104, %p105
    %p108 = scmp.ne.s32.totalorder %s91, %s107
    %p109 = scmp.eq.s32.totalorder %s15, 0
    %p110 = por %p108, %p109
    %p111 = scmp.le.s32.totalorder 1, %s9
    %p112 = scmp.lt.s32.totalorder %s9, 3
    %p113 = pnand %p111, %p112
    %p114 = pneg %p113
    // Predicated region
    $region9: #{tpu_custom_call.1} parent=5 // pred_check
      _
    $region10: #{tpu_custom_call.1} parent=5 // pred_check_branch
      %116 = sbr.rel (%p113) target = $region12
    $region11: #{tpu_custom_call.1} parent=5 // pred_region
      %s117 = ssub.s32 %s9, 1
      // Predicated region
      $region13: #{tpu_custom_call.1} parent=11 // pred_check
        %p118 = pneg %p56
      $region14: #{tpu_custom_call.1} parent=11 // pred_check_branch
        %120 = sbr.rel (%p118) target = $region16
      $region15: #{tpu_custom_call.1} parent=11 // pred_region
        _
      $region16: #{tpu_custom_call.1} parent=11 // pred_fallthru
        _
      // Predicated region
      $region17: #{tpu_custom_call.1} parent=11 // pred_check
        %p121 = pneg %p77
      $region18: #{tpu_custom_call.1} parent=11 // pred_check_branch
        %123 = sbr.rel (%p121) target = $region20
      $region19: #{tpu_custom_call.1} parent=11 // pred_region
        _
      $region20: #{tpu_custom_call.1} parent=11 // pred_fallthru
        _
    $region12: #{tpu_custom_call.1} parent=5 // pred_fallthru
      _
    %p124 = scmp.lt.s32.totalorder %s9, 2
    // Predicated region
    $region21: #{tpu_custom_call.1} parent=5 // pred_check
      %p125 = pneg %p124
    $region22: #{tpu_custom_call.1} parent=5 // pred_check_branch
      %127 = sbr.rel (%p125) target = $region24
    $region23: #{tpu_custom_call.1} parent=5 // pred_region
      // Predicated region
      $region25: #{tpu_custom_call.1} parent=23 // pred_check
        %p128 = pneg %p29
      $region26: #{tpu_custom_call.1} parent=23 // pred_check_branch
        %130 = sbr.rel (%p128) target = $region28
      $region27: #{tpu_custom_call.1} parent=23 // pred_region
        %p131 = scmp.lt.s32.totalorder %s9, 1
        %s132 = scalar_select %p131, %s9, 1
        %s133 = smul.addr %s132, 8
        %s134 = scalar_lea.vmem %s0, %s133
      $region28: #{tpu_custom_call.1} parent=23 // pred_fallthru
        _
    $region24: #{tpu_custom_call.1} parent=5 // pred_fallthru
      _
    %p135 = scmp.le.s32.totalorder 1, %s9
    %p136 = scmp.lt.s32.totalorder %s9, 3
    %p137 = pnand %p135, %p136
    %p138 = pneg %p137
    // Predicated region
    $region29: #{tpu_custom_call.1} parent=5 // pred_check
      _
    $region30: #{tpu_custom_call.1} parent=5 // pred_check_branch
      %140 = sbr.rel (%p137) target = $region32
    $region31: #{tpu_custom_call.1} parent=5 // pred_region
      %s141 = ssub.s32 %s9, 1
      %p142 = scmp.lt.s32.totalorder %s14, 1
      %s143 = scalar_select %p142, %s14, 1
      %s144 = smul.addr %s143, 8
      %s145 = scalar_lea.vmem %s0, %s144
      %p146 = pneg %p35
      %p147 = pneg %p32
      %p148 = pneg %p56
      %p149 = pneg %p53
      %p150 = pneg %p77
      %p151 = pneg %p74
      %p152 = pneg %p103
      %p153 = pneg %p100
      %p154 = scmp.lt.s32.totalorder %s14, 1
      %s155 = scalar_select %p154, %s14, 1
      %s156 = smul.addr %s155, 2
      %s157 = smul.addr %s156, 8
      %s158 = scalar_lea.vmem %s3, %s157
      %p159 = scmp.lt.s32.totalorder %s14, 1
      %s160 = scalar_select %p159, %s14, 1
      %s161 = smul.addr %s160, 8
      %s162 = scalar_lea.vmem %s0, %s161
      %p163 = scmp.lt.s32.totalorder %s14, 1
      %s164 = scalar_select %p163, %s14, 1
      %s165 = smul.addr %s164, 2
      %s166 = smul.addr %s165, 8
      %s167 = scalar_lea.vmem %s3, %s166
      %v169 = vld [vmem:[%s1] sm:$0xff]
      %v170 = vld [vmem:[%s2] sm:$0xff]
      %v171 = vld [vmem:[%s2 + $0x8] sm:$0xff]
      %v172 = vpack.c.bf16 %v171, %v170
      %v173 = vld [vmem:[%s162] sm:$0xff]
      %vm174 = vcmask 1048560
      %175 = vst.msk [vmem:[#allocation2] sm:$0xff] %vm174, 0.0
      %vm176 = vcmask 146560
      %177 = vst.msk [vmem:[#allocation2 + $0x8] sm:$0xff] %vm176, 0.0
      %v178 = vmax.f32 %v173, 0.0
      %vm179 = vcmask 130048
      %180 = vst.msk [vmem:[#allocation2 + $0x8] sm:$0xff] %vm179, %v178
      %v181 = vld [vmem:[#allocation2] sm:$0xff]
      %v182 = vld [vmem:[#allocation2 + $0x8] sm:$0xff]
      %184 = vset.pattern.permute.xlu0 0
      %185 = vperm.xlu0 %184, %v169
      %v186 = vpop.permute.xlu0 %185
      %v188 = vmul.f32 %v181, %v186
      %v189 = vmul.f32 %v182, %v186
      %190 = vset.pattern.permute.xlu0 1
      %191 = vperm.xlu0 %190, %v169
      %v192 = vpop.permute.xlu0 %191
      %v194 = vmul.f32 %v182, %v192
      %196 = vrot.lane.b32.xlu0 %v194, 126
      %v197 = vpop.permute.xlu0 %196
      %v199 = vadd.f32 %v188, %v197
      %v200 = vadd.f32 %v189, %v197
      %201 = vset.pattern.permute.xlu0 2
      %202 = vperm.xlu0 %201, %v169
      %v203 = vpop.permute.xlu0 %202
      %v205 = vmul.f32 %v182, %v203
      %207 = vrot.lane.b32.xlu0 %v205, 124
      %v208 = vpop.permute.xlu0 %207
      %v210 = vadd.f32 %v199, %v208
      %v211 = vadd.f32 %v200, %v208
      %v212 = vpack.c.bf16 %v210, %v210
      %v213 = vpack.c.bf16 %v211, %v211
      %216 = vrot.lane.b32.xlu0 %v212, 2
      %v217 = vpop.permute.xlu0 %216
      %218 = vrot.lane.b32.xlu0 %v213, 2
      %v219 = vpop.permute.xlu0 %218
      %vm220 = vcmask 15360
      %v221 = vsel %vm220, %v217, %v219
      %vm222 = vcmask 64512
      %v224 = vsel %vm222, %v172, 0
      %vm226 = vcmask 1043456
      %v228 = vsel %vm226, %v221, 0
      %230 = vmatprep.subr.bf16.mxu0 0
      %231 = vmatpush1.bf16.msra.mxu0 0
      %232 = vmatprep.subr.bf16.mxu0 0
      %233 = vmatpush1.bf16.msra.mxu0 0
      %234 = vmatprep.subr.bf16.mxu0 0
      %235 = vmatpush1.bf16.msra.mxu0 0
      %236 = vmatprep.subr.bf16.mxu0 0
      %237 = vmatpush1.bf16.msra.mxu0 0
      %238 = vmatprep.subr.bf16.mxu0 0
      %239 = vmatpush1.bf16.msra.mxu0 0
      %240 = vmatprep.subr.bf16.mxu0 0
      %241 = vmatpush1.bf16.msra.mxu0 0
      %242 = vmatprep.subr.bf16.mxu0 0
      %243 = vmatpush1.bf16.msra.mxu0 0
      %244 = vmatprep.subr.bf16.mxu0 0
      %245 = vmatpush1.bf16.msra.mxu0 %v228
      %246 = vmatprep.subr.bf16.mxu0 0
      %247 = vmatpush2.bf16.msra.mxu0 0
      %248 = vmatprep.subr.bf16.mxu0 0
      %249 = vmatpush2.bf16.msra.mxu0 0
      %250 = vmatprep.subr.bf16.mxu0 0
      %251 = vmatpush2.bf16.msra.mxu0 0
      %252 = vmatprep.subr.bf16.mxu0 0
      %253 = vmatpush2.bf16.msra.mxu0 0
      %254 = vmatprep.subr.bf16.mxu0 0
      %255 = vmatpush2.bf16.msra.mxu0 0
      %256 = vmatprep.subr.bf16.mxu0 0
      %257 = vmatpush2.bf16.msra.mxu0 0
      %258 = vmatprep.subr.bf16.mxu0 0
      %259 = vmatpush2.bf16.msra.mxu0 0
      %260 = vmatprep.subr.bf16.mxu0 0
      %261 = vmatpush2.bf16.msra.mxu0 0
      %262 = vmatprep.mubr.bf16.mxu0 0
      %263 = vmatmul.mubr.bf16.gmra.mxu0 %v224
      %v264 = vpop.f32.mrf.mxu0
      %v265 = vadd.f32 0.0, %v264
      %v266 = vpop.f32.mrf.mxu0
      %v267 = vpop.f32.mrf.mxu0
      %v268 = vadd.f32 0.0, %v267
      %v269 = vpop.f32.mrf.mxu0
      %270 = vdwg.mxu0
      %v271 = vsel %vm179, %v265, 0.0
      %272 = vadd.xlane.f32.xlu0 %v271
      %v273 = vpop.xlane.xlu0 %272
      %v274 = vsel %vm179, %v268, 0.0
      %275 = vadd.xlane.f32.xlu0 %v274
      %v276 = vpop.xlane.xlu0 %275
      %v277 = vadd.f32 %v273, 0.0
      %v278 = vadd.f32 %v276, 0.0
      %v279 = vmul.f32 %v265, %v265
      %v280 = vmul.f32 %v268, %v268
      %v281 = vsel %vm179, %v279, 0.0
      %282 = vadd.xlane.f32.xlu0 %v281
      %v283 = vpop.xlane.xlu0 %282
      %v284 = vsel %vm179, %v280, 0.0
      %285 = vadd.xlane.f32.xlu0 %v284
      %v286 = vpop.xlane.xlu0 %285
      %v287 = vadd.f32 %v283, 0.0
      %v288 = vadd.f32 %v286, 0.0
      %vm289 = vcmask 7168
      %v290 = vsel %vm289, %v277, %v287
      %v291 = vsel %vm289, %v278, %v288
      %vm292 = vcmask 15360
      %293 = vst.msk [vmem:[%s167] sm:$0xff] %vm292, %v290
      %294 = vst.msk [vmem:[%s167 + $0x8] sm:$0xff] %vm292, %v291
      %p295 = scmp.lt.s32.totalorder %s14, 1
      %s296 = scalar_select %p295, %s14, 1
      %s297 = smul.addr %s296, 2
      %s298 = smul.addr %s297, 8
      %s299 = scalar_lea.vmem %s3, %s298
      // Predicated region
      $region33: #{tpu_custom_call.1} parent=31 // pred_check
        %p300 = pneg %p100
      $region34: #{tpu_custom_call.1} parent=31 // pred_check_branch
        %302 = sbr.rel (%p300) target = $region36
      $region35: #{tpu_custom_call.1} parent=31 // pred_region
        _
      $region36: #{tpu_custom_call.1} parent=31 // pred_fallthru
        _
    $region32: #{tpu_custom_call.1} parent=5 // pred_fallthru
      _
    %p303 = scmp.le.s32.totalorder 2, %s9
    // Predicated region
    $region37: #{tpu_custom_call.1} parent=5 // pred_check
      %p304 = pneg %p303
    $region38: #{tpu_custom_call.1} parent=5 // pred_check_branch
      %306 = sbr.rel (%p304) target = $region40
    $region39: #{tpu_custom_call.1} parent=5 // pred_region
      %s307 = ssub.s32 %s9, 2
      // Predicated region
      $region41: #{tpu_custom_call.1} parent=39 // pred_check
        %p308 = pneg %p106
      $region42: #{tpu_custom_call.1} parent=39 // pred_check_branch
        %310 = sbr.rel (%p308) target = $region44
      $region43: #{tpu_custom_call.1} parent=39 // pred_region
        %p311 = scmp.lt.s32.totalorder %s15, 1
        %s312 = scalar_select %p311, %s15, 1
        %s313 = smul.addr %s312, 2
        %s314 = smul.addr %s313, 8
        %s315 = scalar_lea.vmem %s3, %s314
      $region44: #{tpu_custom_call.1} parent=39 // pred_fallthru
        _
    $region40: #{tpu_custom_call.1} parent=5 // pred_fallthru
      _
  $region6: #{tpu_custom_call.1} parent=0 // loop_footer
    %s13 = sadd.s32 1, %s9
  $region7: #{tpu_custom_call.1} parent=0 // loop_footer_branch
    %8 = sbr.rel target = $region3
  $region8: #{tpu_custom_call.1} parent=0 // loop_exit
    _

</llo_original>
